<compile_context>
chip_gen: v7x
topology: tpu7x:2x2x1
jax: 0.10.0
libtpu: 0.0.40
codegen_flags: <defaults>
</compile_context>

<pallas_src>
import functools

import jax
import jax.numpy as jnp
from jax.experimental import pallas as pl
from jax.experimental.pallas import tpu as pltpu


def _round_up(v, m):
    return ((v + m - 1) // m) * m


def _sigmoid(x):
    # 0.5*tanh(0.5*x)+0.5 == 1/(1+exp(-x)); tanh runs on the EUP (free VLIW slot here)
    # and avoids a VALU divide / Newton sequence.
    return 0.5 * jnp.tanh(0.5 * x) + 0.5


def _mlp_kernel(x_ref, w1t_ref, b1_ref, w2t_ref, w3t_ref, o_ref, *, balancing_bias):
    # x_ref:   (TB, IN)      batch tile, original f32 -- cast to compute dtype in-kernel
    # w1t_ref: (IN, H1_p)    hidden1.weight^T (compute dtype), grid-invariant
    # b1_ref:  (1, H1_p)     hidden1.bias (f32)
    # w2t_ref: (H1_p, H2_p)  hidden2.weight^T (no bias)
    # w3t_ref: (H2_p, OUT)   output.weight^T (no bias), OUT un-padded
    # o_ref:   (TB, OUT)     f32
    cdt = w1t_ref.dtype
    x = x_ref[...].astype(cdt)

    h1 = jnp.dot(x, w1t_ref[...], preferred_element_type=jnp.float32)
    h1 = _sigmoid(h1 + b1_ref[...])          # activation math stays f32 (v5e has no bf16 VPU)
    if balancing_bias:
        h1 = h1 - 1.0

    h2 = jnp.dot(h1.astype(cdt), w2t_ref[...], preferred_element_type=jnp.float32)
    h2 = _sigmoid(h2)

    out = jnp.dot(h2.astype(cdt), w3t_ref[...], preferred_element_type=jnp.float32)
    o_ref[...] = out.astype(o_ref.dtype)


def _pad2d(a, rows, cols):
    if a.shape == (rows, cols):
        return a
    return jnp.pad(a, ((0, rows - a.shape[0]), (0, cols - a.shape[1])))


def general_regression_nn_forward(x, params, *, balancing_bias=False,
                                  batch_tile=2048, compute_dtype=jnp.bfloat16):
    """Pallas forward pass for GeneralRegressionNN.

    x:      (B, input_size) float32
    params: dict with PyTorch-convention shapes:
            'w1' (H1, IN), 'b1' (H1,), 'w2' (H2, H1), 'w3' (OUT, H2)
    """
    x = jnp.asarray(x, jnp.float32)
    B, IN = x.shape
    w1, b1, w2, w3 = params["w1"], params["b1"], params["w2"], params["w3"]
    H1, H2, OUT = w1.shape[0], w2.shape[0], w3.shape[0]
    cdt = jnp.dtype(compute_dtype)

    # Hidden dims padded to 128 -> lane-dense intermediates; true IN/OUT stay un-padded.
    H1_p = _round_up(H1, 128)
    H2_p = _round_up(H2, 128)

    # ---- generation-aware VMEM ceiling (v5e/v6e 128 MiB, v7x 64 MiB) ----------------
    try:
        vmem_cap = int(pltpu.get_tpu_info().vmem_capacity_bytes)
    except Exception:  # hardware-info query only; does NOT guard kernel build/run
        vmem_cap = 64 * 1024 * 1024
    vmem_ceiling = max(32 * 1024 * 1024, int(0.8 * vmem_cap))

    bytes_weights = (IN * H1_p + H1_p * H2_p + H2_p * OUT) * cdt.itemsize + H1_p * 4
    # TODO(synk): add a hidden-dim tiled path (pltpu.emit_pipeline over H1/H2 blocks)
    # when resident weight bytes exceed ~20 MiB, for large nets on v7x's 64 MiB VMEM.

    def vmem_needed(tile):
        b_x = tile * IN * 4                       # x stays f32 in HBM
        b_out = tile * OUT * 4
        b_act = 2 * tile * (H1_p + H2_p) * 4      # f32 intermediates
        return 2 * b_x + 2 * b_out + 2 * bytes_weights + b_act

    # ---- batch tile: large (amortize ~0.35us/grid-step), multiple of 16, fits VMEM ---
    B_r = _round_up(B, 16)
    bt = min(_round_up(max(16, batch_tile), 16), B_r)
    # v7x has 2 TensorCores sharded over the "parallel" batch axis: keep >=2 grid steps
    # when the batch is big enough to split, instead of one monolithic tile.
    if B_r > 512 and pl.cdiv(B_r, bt) < 2:
        bt = _round_up(pl.cdiv(B_r, 2), 16)
    while vmem_needed(bt) > vmem_ceiling and bt > 16:
        bt = _round_up(bt // 2, 16)

    num_tiles = pl.cdiv(B, bt)
    B_p = num_tiles * bt

    # ---- wrapper-side glue: batch-row pad only (no feature pad, no x cast) -----------
    x_p = x if B_p == B else jnp.pad(x, ((0, B_p - B), (0, 0)))
    w1t = _pad2d(jnp.asarray(w1, jnp.float32).T.astype(cdt), IN, H1_p)    # (IN, H1_p)
    b1r = _pad2d(jnp.asarray(b1, jnp.float32)[None, :], 1, H1_p)          # (1, H1_p) f32
    w2t = _pad2d(jnp.asarray(w2, jnp.float32).T.astype(cdt), H1_p, H2_p)  # (H1_p, H2_p)
    w3t = _pad2d(jnp.asarray(w3, jnp.float32).T.astype(cdt), H2_p, OUT)   # (H2_p, OUT)

    needed = vmem_needed(bt)
    vmem_limit = int(min(vmem_ceiling, max(32 * 1024 * 1024, int(1.25 * needed))))

    cost = pl.CostEstimate(
        flops=2 * B_p * (IN * H1_p + H1_p * H2_p + H2_p * OUT),
        transcendentals=B_p * (H1_p + H2_p),
        bytes_accessed=int(B_p * IN * 4                                   # x (f32)
                           + (w1t.size + w2t.size + w3t.size) * cdt.itemsize
                           + b1r.size * 4
                           + B_p * OUT * 4),                              # output (f32)
    )

    kernel = functools.partial(_mlp_kernel, balancing_bias=balancing_bias)

    out_p = pl.pallas_call(
        kernel,
        out_shape=jax.ShapeDtypeStruct((B_p, OUT), jnp.float32),
        grid_spec=pltpu.PrefetchScalarGridSpec(
            num_scalar_prefetch=0,
            grid=(num_tiles,),
            in_specs=[
                pl.BlockSpec((bt, IN), lambda i: (i, 0)),      # x: tiled over batch
                pl.BlockSpec((IN, H1_p), lambda i: (0, 0)),    # grid-invariant weights
                pl.BlockSpec((1, H1_p), lambda i: (0, 0)),
                pl.BlockSpec((H1_p, H2_p), lambda i: (0, 0)),
                pl.BlockSpec((H2_p, OUT), lambda i: (0, 0)),
            ],
            out_specs=pl.BlockSpec((bt, OUT), lambda i: (i, 0)),
        ),
        compiler_params=pltpu.CompilerParams(
            dimension_semantics=("parallel",),
            vmem_limit_bytes=vmem_limit,
        ),
        cost_estimate=cost,
    )(x_p, w1t, b1r, w2t, w3t)

    return out_p if B_p == B else out_p[:B]


# ------------------------------ test harness ---------------------------------------


def _init_params(key, input_size, hidden_size1, hidden_size2, output_size):
    """Deterministic init mimicking PyTorch nn.Linear default (uniform +/- 1/sqrt(fan_in))."""
    k1, k2, k3, k4 = jax.random.split(key, 4)
    b1 = 1.0 / jnp.sqrt(jnp.float32(input_size))
    b2 = 1.0 / jnp.sqrt(jnp.float32(hidden_size1))
    b3 = 1.0 / jnp.sqrt(jnp.float32(hidden_size2))
    return {
        "w1": jax.random.uniform(k1, (hidden_size1, input_size), jnp.float32, -b1, b1),
        "b1": jax.random.uniform(k2, (hidden_size1,), jnp.float32, -b1, b1),
        "w2": jax.random.uniform(k3, (hidden_size2, hidden_size1), jnp.float32, -b2, b2),
        "w3": jax.random.uniform(k4, (output_size, hidden_size2), jnp.float32, -b3, b3),
    }


def _reference_forward(x, params, balancing_bias=False):
    h = jax.nn.sigmoid(x @ params["w1"].T + params["b1"])
    if balancing_bias:
        h = h - 1.0
    h = jax.nn.sigmoid(h @ params["w2"].T)
    return h @ params["w3"].T


if __name__ == "__main__":
    key = jax.random.PRNGKey(0)
    kx, kp, kx2 = jax.random.split(key, 3)

    # Small shapes consistent with the module's forward (pure MLP on (B, input_size)).
    B, INPUT, H1, H2, OUT = 8, 16, 32, 32, 4
    x = jax.random.normal(kx, (B, INPUT), dtype=jnp.float32)
    params = _init_params(kp, INPUT, H1, H2, OUT)
    ref = _reference_forward(x, params, balancing_bias=False)

    # 1) exact-path check: f32 compute dtype, tight tolerance.
    out_f32 = jax.block_until_ready(
        general_regression_nn_forward(x, params, balancing_bias=False,
                                      compute_dtype=jnp.float32))
    assert out_f32.shape == (B, OUT)
    assert jnp.allclose(out_f32, ref, atol=1e-4, rtol=1e-4), "f32 kernel mismatch"

    # 2) default fast path: bf16 matmul operands, f32 accumulation + activation math.
    out_bf16 = jax.block_until_ready(
        general_regression_nn_forward(x, params, balancing_bias=False))
    assert jnp.allclose(out_bf16, ref, atol=3e-2, rtol=3e-2), "bf16 kernel mismatch"

    # 3) ragged batch (not a multiple of the tile), multi-step grid + balancing_bias path.
    B2 = 200
    x2 = jax.random.normal(kx2, (B2, INPUT), dtype=jnp.float32)
    ref2 = _reference_forward(x2, params, balancing_bias=True)
    out2 = jax.block_until_ready(
        general_regression_nn_forward(x2, params, balancing_bias=True, batch_tile=64))
    assert out2.shape == (B2, OUT)
    assert jnp.allclose(out2, ref2, atol=3e-2, rtol=3e-2), "ragged/bias kernel mismatch"

    print("KERNEL_OK")
</pallas_src>

<mosaic_0001>
module attributes {stable_mosaic.version = 11 : i64} {
  func.func @_mlp_kernel(%arg0: i32, %arg1: memref<16x16xf32, #tpu.memory_space<vmem>>, %arg2: memref<16x128xf32, #tpu.memory_space<vmem>>, %arg3: memref<1x128xf32, #tpu.memory_space<vmem>>, %arg4: memref<128x128xf32, #tpu.memory_space<vmem>>, %arg5: memref<128x4xf32, #tpu.memory_space<vmem>>, %arg6: memref<16x4xf32, #tpu.memory_space<vmem>>) attributes {dimension_semantics = [#tpu.dimension_semantics<parallel>], iteration_bounds = array<i64: 1>, scalar_prefetch = 0 : i64, scratch_operands = 0 : i64, tpu.core_type = #tpu.core_type<tc>, window_params = [{transform_indices = @transform_0, window_bounds = array<i64: 16, 16>}, {pipeline_mode = #tpu.pipeline_mode<synchronous>, transform_indices = @transform_1, window_bounds = array<i64: 16, 128>}, {pipeline_mode = #tpu.pipeline_mode<synchronous>, transform_indices = @transform_2, window_bounds = array<i64: 1, 128>}, {pipeline_mode = #tpu.pipeline_mode<synchronous>, transform_indices = @transform_3, window_bounds = array<i64: 128, 128>}, {pipeline_mode = #tpu.pipeline_mode<synchronous>, transform_indices = @transform_4, window_bounds = array<i64: 128, 4>}, {transform_indices = @transform_5, window_bounds = array<i64: 16, 4>}]} {
    %c0 = arith.constant 0 : index
    %c0_0 = arith.constant 0 : index
    %0 = vector.load %arg1[%c0, %c0_0] : memref<16x16xf32, #tpu.memory_space<vmem>>, vector<16x16xf32>
    %c0_1 = arith.constant 0 : index
    %c0_2 = arith.constant 0 : index
    %1 = vector.load %arg2[%c0_1, %c0_2] : memref<16x128xf32, #tpu.memory_space<vmem>>, vector<16x128xf32>
    %cst = arith.constant dense<0.000000e+00> : vector<16x128xf32>
    %2 = tpu.matmul %0, %1, %cst {dimension_numbers = #tpu.dot_dimension_numbers<[1], [0], [0], [1], [0, 0, 1, 1], [], []>} : vector<16x16xf32>, vector<16x128xf32>, vector<16x128xf32> -> vector<16x128xf32>
    %c0_3 = arith.constant 0 : index
    %c0_4 = arith.constant 0 : index
    %3 = vector.load %arg3[%c0_3, %c0_4] : memref<1x128xf32, #tpu.memory_space<vmem>>, vector<1x128xf32>
    %4 = vector.broadcast %3 : vector<1x128xf32> to vector<16x128xf32>
    %5 = arith.addf %2, %4 : vector<16x128xf32>
    %cst_5 = arith.constant 5.000000e-01 : f32
    %6 = vector.broadcast %cst_5 : f32 to vector<16x128xf32>
    %7 = arith.mulf %6, %5 : vector<16x128xf32>
    %8 = math.tanh %7 : vector<16x128xf32>
    %cst_6 = arith.constant 5.000000e-01 : f32
    %9 = vector.broadcast %cst_6 : f32 to vector<16x128xf32>
    %10 = arith.mulf %9, %8 : vector<16x128xf32>
    %cst_7 = arith.constant 5.000000e-01 : f32
    %11 = vector.broadcast %cst_7 : f32 to vector<16x128xf32>
    %12 = arith.addf %10, %11 : vector<16x128xf32>
    %c0_8 = arith.constant 0 : index
    %c0_9 = arith.constant 0 : index
    %13 = vector.load %arg4[%c0_8, %c0_9] : memref<128x128xf32, #tpu.memory_space<vmem>>, vector<128x128xf32>
    %cst_10 = arith.constant dense<0.000000e+00> : vector<16x128xf32>
    %14 = tpu.matmul %12, %13, %cst_10 {dimension_numbers = #tpu.dot_dimension_numbers<[1], [0], [0], [1], [0, 0, 1, 1], [], []>} : vector<16x128xf32>, vector<128x128xf32>, vector<16x128xf32> -> vector<16x128xf32>
    %cst_11 = arith.constant 5.000000e-01 : f32
    %15 = vector.broadcast %cst_11 : f32 to vector<16x128xf32>
    %16 = arith.mulf %15, %14 : vector<16x128xf32>
    %17 = math.tanh %16 : vector<16x128xf32>
    %cst_12 = arith.constant 5.000000e-01 : f32
    %18 = vector.broadcast %cst_12 : f32 to vector<16x128xf32>
    %19 = arith.mulf %18, %17 : vector<16x128xf32>
    %cst_13 = arith.constant 5.000000e-01 : f32
    %20 = vector.broadcast %cst_13 : f32 to vector<16x128xf32>
    %21 = arith.addf %19, %20 : vector<16x128xf32>
    %c0_14 = arith.constant 0 : index
    %c0_15 = arith.constant 0 : index
    %22 = vector.load %arg5[%c0_14, %c0_15] : memref<128x4xf32, #tpu.memory_space<vmem>>, vector<128x4xf32>
    %cst_16 = arith.constant dense<0.000000e+00> : vector<16x4xf32>
    %23 = tpu.matmul %21, %22, %cst_16 {dimension_numbers = #tpu.dot_dimension_numbers<[1], [0], [0], [1], [0, 0, 1, 1], [], []>} : vector<16x128xf32>, vector<128x4xf32>, vector<16x4xf32> -> vector<16x4xf32>
    %c0_17 = arith.constant 0 : index
    %c0_18 = arith.constant 0 : index
    %24 = vector.load %arg6[%c0_17, %c0_18] : memref<16x4xf32, #tpu.memory_space<vmem>>, vector<16x4xf32>
    tpu.vector_store %arg6[%c0_17, %c0_18], %23 {strides = array<i32>} : memref<16x4xf32, #tpu.memory_space<vmem>>, vector<16x4xf32>,
    return
  }
  func.func @transform_0(%arg0: i32) -> (i32, i32) {
    %c0_i32 = arith.constant 0 : i32
    %c0_i32_0 = arith.constant 0 : i32
    return %arg0, %c0_i32 : i32, i32
  }
  func.func @transform_1(%arg0: i32) -> (i32, i32) {
    %c0_i32 = arith.constant 0 : i32
    %c0_i32_0 = arith.constant 0 : i32
    %c0_i32_1 = arith.constant 0 : i32
    return %c0_i32, %c0_i32_0 : i32, i32
  }
  func.func @transform_2(%arg0: i32) -> (i32, i32) {
    %c0_i32 = arith.constant 0 : i32
    %c0_i32_0 = arith.constant 0 : i32
    %c0_i32_1 = arith.constant 0 : i32
    return %c0_i32, %c0_i32_0 : i32, i32
  }
  func.func @transform_3(%arg0: i32) -> (i32, i32) {
    %c0_i32 = arith.constant 0 : i32
    %c0_i32_0 = arith.constant 0 : i32
    %c0_i32_1 = arith.constant 0 : i32
    return %c0_i32, %c0_i32_0 : i32, i32
  }
  func.func @transform_4(%arg0: i32) -> (i32, i32) {
    %c0_i32 = arith.constant 0 : i32
    %c0_i32_0 = arith.constant 0 : i32
    %c0_i32_1 = arith.constant 0 : i32
    return %c0_i32, %c0_i32_0 : i32, i32
  }
  func.func @transform_5(%arg0: i32) -> (i32, i32) {
    %c0_i32 = arith.constant 0 : i32
    %c0_i32_0 = arith.constant 0 : i32
    return %arg0, %c0_i32 : i32, i32
  }
}

</mosaic_0001>

<llo_original>
// kernel: tpu_custom_call.1
$region0: #{tpu_custom_call.1}
  #allocation0 [shape = 'u32[]', space=smem, size = 0x4, offset = 0x4, fixed_abs, tag = 'smem constant byte address 0x4 - core index']
  #allocation1 [shape = 'u32[144,128]{1,0:T(1,128)}', space=vmem, size = 0x12000, scoped, tag = 'internal scratch']
  %s0 = inlined_call_operand.hbm [shape: f32[16,16], index: 0, kind: input, shape index: {}]
  %s1 = inlined_call_operand.hbm [shape: f32[16,128], index: 1, kind: input, shape index: {}]
  %s2 = inlined_call_operand.vmem [shape: f32[1,128], index: 2, kind: input, shape index: {}]
  %s3 = inlined_call_operand.vmem [shape: f32[128,128], index: 3, kind: input, shape index: {}]
  %s4 = inlined_call_operand.vmem [shape: f32[128,4], index: 4, kind: input, shape index: {}]
  %s5 = inlined_call_operand.vmem [shape: f32[16,4], index: 5, kind: output, shape index: {}]
  %s6 = sld [smem:[#allocation0]]
  $region38: #{tpu_custom_call.1} parent=0
    _
  %s8 = ssub.s32 1, %s6
  %s9 = scalar_select 0, %s8, %s6
  $region1: #{tpu_custom_call.1} parent=0
    #allocation2 [shape = 'u8[8192]{0}', space=vmem, size = 0x2000, scoped, tag = 'input window, operand 0, single buffered']
    #allocation3 [shape = 's32[1]{0}', space=sflag, size = 0x4, scoped, tag = 'scoped memory for tpu_custom_call.1']
    #allocation4 [shape = 'u8[8192]{0}', space=vmem, size = 0x2000, scoped, tag = 'input window, operand 1, single buffered']
    #allocation5 [shape = 's32[1]{0}', space=sflag, size = 0x4, scoped, tag = 'scoped memory for tpu_custom_call.1']
    %10 = vsyncpa [#allocation3], 0
    %11 = vsyncpa [#allocation5], 0
    // Predicated region
    $region2: #{tpu_custom_call.1} parent=1 // pred_check
      _
    $region3: #{tpu_custom_call.1} parent=1 // pred_check_branch
      %13 = sbr.rel (0) target = $region5
    $region4: #{tpu_custom_call.1} parent=1 // pred_region
      %s15 = ssub.s32 256, 256
      %16 = vsyncadd [#allocation3], %s15
      %s17 = sshll.u32 [#allocation2], 4
      %s18 = int_to_ptr.vmem [resolvable:$true] %s17
      %23 = dma.hbm_to_vmem [thread:$0]  %s0, 256, %s18, [#allocation3], 128, 128, 8
    $region5: #{tpu_custom_call.1} parent=1 // pred_fallthru
      _
    // Predicated region
    $region6: #{tpu_custom_call.1} parent=1 // pred_check
      _
    $region7: #{tpu_custom_call.1} parent=1 // pred_check_branch
      %25 = sbr.rel (0) target = $region9
    $region8: #{tpu_custom_call.1} parent=1 // pred_region
      %s27 = ssub.s32 256, 256
      %28 = vsyncadd [#allocation5], %s27
      %s29 = sshll.u32 [#allocation4], 4
      %s30 = int_to_ptr.vmem [resolvable:$true] %s29
      %35 = dma.hbm_to_vmem [thread:$0]  %s1, 256, %s30, [#allocation5], 128, 128, 8
    $region9: #{tpu_custom_call.1} parent=1 // pred_fallthru
      _
    // Predicated region
    $region10: #{tpu_custom_call.1} parent=1 // pred_check
      _
    $region11: #{tpu_custom_call.1} parent=1 // pred_check_branch
      %37 = sbr.rel (0) target = $region13
    $region12: #{tpu_custom_call.1} parent=1 // pred_region
      _
    $region13: #{tpu_custom_call.1} parent=1 // pred_fallthru
      _
    // Predicated region
    $region14: #{tpu_custom_call.1} parent=1 // pred_check
      _
    $region15: #{tpu_custom_call.1} parent=1 // pred_check_branch
      %39 = sbr.rel (0) target = $region17
    $region16: #{tpu_custom_call.1} parent=1 // pred_region
      _
    $region17: #{tpu_custom_call.1} parent=1 // pred_fallthru
      _
    // Predicated region
    $region18: #{tpu_custom_call.1} parent=1 // pred_check
      _
    $region19: #{tpu_custom_call.1} parent=1 // pred_check_branch
      %41 = sbr.rel (0) target = $region21
    $region20: #{tpu_custom_call.1} parent=1 // pred_region
      _
    $region21: #{tpu_custom_call.1} parent=1 // pred_fallthru
      _
    // Predicated region
    $region22: #{tpu_custom_call.1} parent=1 // pred_check
      _
    $region23: #{tpu_custom_call.1} parent=1 // pred_check_branch
      %43 = sbr.rel (0) target = $region25
    $region24: #{tpu_custom_call.1} parent=1 // pred_region
      %44 = dma.done [#allocation3], 256
    $region25: #{tpu_custom_call.1} parent=1 // pred_fallthru
      _
    // Predicated region
    $region26: #{tpu_custom_call.1} parent=1 // pred_check
      _
    $region27: #{tpu_custom_call.1} parent=1 // pred_check_branch
      %46 = sbr.rel (0) target = $region29
    $region28: #{tpu_custom_call.1} parent=1 // pred_region
      %47 = dma.done [#allocation5], 256
    $region29: #{tpu_custom_call.1} parent=1 // pred_fallthru
      _
    %v48 = vld [vmem:[#allocation2] sm:$0xff]
    %v49 = vld [vmem:[#allocation2 + $0x8] sm:$0xff]
    %v50 = vld [vmem:[#allocation4] sm:$0xff]
    %v51 = vld [vmem:[#allocation4 + $0x8] sm:$0xff]
    %v52 = vld [vmem:[%s2] sm:$0x1]
    %v54 = vlaneseq
    %v55 = vshrl.u32 %v54, 7
    %v56 = vsub.s32 0, %v55
    %v57 = vrot.slane %v52, %v56
    %vm59 = vcmask 130048
    %v61 = vsel %vm59, %v48, 0
    %v64 = vsel %vm59, %v49, 0
    %66 = vmatprep.subr.mxu0 0.0
    %67 = vmatpush1.msra.mxu0 %v50
    %68 = vmatprep.subr.mxu0 0.0
    %69 = vmatpush1.msra.mxu0 %v51
    %70 = vmatprep.subr.mxu0 0.0
    %71 = vmatpush1.msra.mxu0 0.0
    %72 = vmatprep.subr.mxu0 0.0
    %73 = vmatpush1.msra.mxu0 0.0
    %74 = vmatprep.subr.mxu0 0.0
    %75 = vmatpush1.msra.mxu0 0.0
    %76 = vmatprep.subr.mxu0 0.0
    %77 = vmatpush1.msra.mxu0 0.0
    %78 = vmatprep.subr.mxu0 0.0
    %79 = vmatpush1.msra.mxu0 0.0
    %80 = vmatprep.subr.mxu0 0.0
    %81 = vmatpush1.msra.mxu0 0.0
    %82 = vmatprep.subr.mxu0 0.0
    %83 = vmatpush1.msra.mxu0 0.0
    %84 = vmatprep.subr.mxu0 0.0
    %85 = vmatpush1.msra.mxu0 0.0
    %86 = vmatprep.subr.mxu0 0.0
    %87 = vmatpush1.msra.mxu0 0.0
    %88 = vmatprep.subr.mxu0 0.0
    %89 = vmatpush1.msra.mxu0 0.0
    %90 = vmatprep.subr.mxu0 0.0
    %91 = vmatpush1.msra.mxu0 0.0
    %92 = vmatprep.subr.mxu0 0.0
    %93 = vmatpush1.msra.mxu0 0.0
    %94 = vmatprep.subr.mxu0 0.0
    %95 = vmatpush1.msra.mxu0 0.0
    %96 = vmatprep.subr.mxu0 0.0
    %97 = vmatpush1.msra.mxu0 0.0
    %98 = vmatprep.subr.mxu0 0.0
    %99 = vmatpush1.msra.mxu0 0.0
    %100 = vmatprep.subr.mxu0 0.0
    %101 = vmatpush1.msra.mxu0 0.0
    %102 = vmatprep.subr.mxu0 0.0
    %103 = vmatpush1.msra.mxu0 0.0
    %104 = vmatprep.subr.mxu0 0.0
    %105 = vmatpush1.msra.mxu0 0.0
    %106 = vmatprep.subr.mxu0 0.0
    %107 = vmatpush1.msra.mxu0 0.0
    %108 = vmatprep.subr.mxu0 0.0
    %109 = vmatpush1.msra.mxu0 0.0
    %110 = vmatprep.subr.mxu0 0.0
    %111 = vmatpush1.msra.mxu0 0.0
    %112 = vmatprep.subr.mxu0 0.0
    %113 = vmatpush1.msra.mxu0 0.0
    %114 = vmatprep.subr.mxu0 0.0
    %115 = vmatpush1.msra.mxu0 0.0
    %116 = vmatprep.subr.mxu0 0.0
    %117 = vmatpush1.msra.mxu0 0.0
    %118 = vmatprep.subr.mxu0 0.0
    %119 = vmatpush1.msra.mxu0 0.0
    %120 = vmatprep.subr.mxu0 0.0
    %121 = vmatpush1.msra.mxu0 0.0
    %122 = vmatprep.subr.mxu0 0.0
    %123 = vmatpush1.msra.mxu0 0.0
    %124 = vmatprep.subr.mxu0 0.0
    %125 = vmatpush1.msra.mxu0 0.0
    %126 = vmatprep.subr.mxu0 0.0
    %127 = vmatpush1.msra.mxu0 0.0
    %128 = vmatprep.subr.mxu0 0.0
    %129 = vmatpush1.msra.mxu0 0.0
    %130 = vmatprep.mubr.f32.mxu0 0.0
    %131 = vmatmul.mubr.f32.gmra.mrb[0].mxu0 %v61
    %v132 = vpop.f32.mrb[0].mxu0
    %v133 = vadd.f32 %v57, %v132
    %v134 = vpop.f32.mrb[0].mxu0
    %135 = vmatprep.mubr.f32.mxu0 0.0
    %136 = vmatmul.mubr.f32.gmra.mrb[0].mxu0 %v64
    %v137 = vpop.f32.mrb[0].mxu0
    %v138 = vadd.f32 %v57, %v137
    %v139 = vpop.f32.mrb[0].mxu0
    %140 = vdwg.mxu0
    %v141 = vmul.f32 %v133, 0.5
    %v142 = vmul.f32 %v138, 0.5
    %v143 = vtanh.pop %v141
    %v144 = vtanh.pop %v142
    %v145 = vmul.f32 %v143, 0.5
    %v146 = vmul.f32 %v144, 0.5
    %v147 = vadd.f32 %v145, 0.5
    %v148 = vadd.f32 %v146, 0.5
    %v149 = vld [vmem:[%s3] sm:$0xff]
    %v150 = vld [vmem:[%s3 + $0x8] sm:$0xff]
    %v151 = vld [vmem:[%s3 + $0x10] sm:$0xff]
    %v152 = vld [vmem:[%s3 + $0x18] sm:$0xff]
    %v153 = vld [vmem:[%s3 + $0x20] sm:$0xff]
    %v154 = vld [vmem:[%s3 + $0x28] sm:$0xff]
    %v155 = vld [vmem:[%s3 + $0x30] sm:$0xff]
    %v156 = vld [vmem:[%s3 + $0x38] sm:$0xff]
    %v157 = vld [vmem:[%s3 + $0x40] sm:$0xff]
    %v158 = vld [vmem:[%s3 + $0x48] sm:$0xff]
    %v159 = vld [vmem:[%s3 + $0x50] sm:$0xff]
    %v160 = vld [vmem:[%s3 + $0x58] sm:$0xff]
    %v161 = vld [vmem:[%s3 + $0x60] sm:$0xff]
    %v162 = vld [vmem:[%s3 + $0x68] sm:$0xff]
    %v163 = vld [vmem:[%s3 + $0x70] sm:$0xff]
    %v164 = vld [vmem:[%s3 + $0x78] sm:$0xff]
    %165 = vmatprep.subr.mxu0 0.0
    %166 = vmatpush1.msra.mxu0 %v149
    %167 = vmatprep.subr.mxu0 0.0
    %168 = vmatpush1.msra.mxu0 %v150
    %169 = vmatprep.subr.mxu0 0.0
    %170 = vmatpush1.msra.mxu0 %v151
    %171 = vmatprep.subr.mxu0 0.0
    %172 = vmatpush1.msra.mxu0 %v152
    %173 = vmatprep.subr.mxu0 0.0
    %174 = vmatpush1.msra.mxu0 %v153
    %175 = vmatprep.subr.mxu0 0.0
    %176 = vmatpush1.msra.mxu0 %v154
    %177 = vmatprep.subr.mxu0 0.0
    %178 = vmatpush1.msra.mxu0 %v155
    %179 = vmatprep.subr.mxu0 0.0
    %180 = vmatpush1.msra.mxu0 %v156
    %181 = vmatprep.subr.mxu0 0.0
    %182 = vmatpush1.msra.mxu0 %v157
    %183 = vmatprep.subr.mxu0 0.0
    %184 = vmatpush1.msra.mxu0 %v158
    %185 = vmatprep.subr.mxu0 0.0
    %186 = vmatpush1.msra.mxu0 %v159
    %187 = vmatprep.subr.mxu0 0.0
    %188 = vmatpush1.msra.mxu0 %v160
    %189 = vmatprep.subr.mxu0 0.0
    %190 = vmatpush1.msra.mxu0 %v161
    %191 = vmatprep.subr.mxu0 0.0
    %192 = vmatpush1.msra.mxu0 %v162
    %193 = vmatprep.subr.mxu0 0.0
    %194 = vmatpush1.msra.mxu0 %v163
    %195 = vmatprep.subr.mxu0 0.0
    %196 = vmatpush1.msra.mxu0 %v164
    %197 = vmatprep.subr.mxu0 0.0
    %198 = vmatpush1.msra.mxu0 0.0
    %199 = vmatprep.subr.mxu0 0.0
    %200 = vmatpush1.msra.mxu0 0.0
    %201 = vmatprep.subr.mxu0 0.0
    %202 = vmatpush1.msra.mxu0 0.0
    %203 = vmatprep.subr.mxu0 0.0
    %204 = vmatpush1.msra.mxu0 0.0
    %205 = vmatprep.subr.mxu0 0.0
    %206 = vmatpush1.msra.mxu0 0.0
    %207 = vmatprep.subr.mxu0 0.0
    %208 = vmatpush1.msra.mxu0 0.0
    %209 = vmatprep.subr.mxu0 0.0
    %210 = vmatpush1.msra.mxu0 0.0
    %211 = vmatprep.subr.mxu0 0.0
    %212 = vmatpush1.msra.mxu0 0.0
    %213 = vmatprep.subr.mxu0 0.0
    %214 = vmatpush1.msra.mxu0 0.0
    %215 = vmatprep.subr.mxu0 0.0
    %216 = vmatpush1.msra.mxu0 0.0
    %217 = vmatprep.subr.mxu0 0.0
    %218 = vmatpush1.msra.mxu0 0.0
    %219 = vmatprep.subr.mxu0 0.0
    %220 = vmatpush1.msra.mxu0 0.0
    %221 = vmatprep.subr.mxu0 0.0
    %222 = vmatpush1.msra.mxu0 0.0
    %223 = vmatprep.subr.mxu0 0.0
    %224 = vmatpush1.msra.mxu0 0.0
    %225 = vmatprep.subr.mxu0 0.0
    %226 = vmatpush1.msra.mxu0 0.0
    %227 = vmatprep.subr.mxu0 0.0
    %228 = vmatpush1.msra.mxu0 0.0
    %229 = vmatprep.mubr.f32.mxu0 0.0
    %230 = vmatmul.mubr.f32.gmra.mrb[0].mxu0 %v147
    %v231 = vpop.f32.mrb[0].mxu0
    %v232 = vadd.f32 0.0, %v231
    %v233 = vpop.f32.mrb[0].mxu0
    %234 = vmatprep.mubr.f32.mxu0 0.0
    %235 = vmatmul.mubr.f32.gmra.mrb[0].mxu0 %v148
    %v236 = vpop.f32.mrb[0].mxu0
    %v237 = vadd.f32 0.0, %v236
    %v238 = vpop.f32.mrb[0].mxu0
    %239 = vdwg.mxu0
    %v240 = vmul.f32 %v232, 0.5
    %v241 = vmul.f32 %v237, 0.5
    %v242 = vtanh.pop %v240
    %v243 = vtanh.pop %v241
    %v244 = vmul.f32 %v242, 0.5
    %v245 = vmul.f32 %v243, 0.5
    %v246 = vadd.f32 %v244, 0.5
    %v247 = vadd.f32 %v245, 0.5
    %v248 = vld [vmem:[%s4] sm:$0xff]
    %v249 = vld [vmem:[%s4 + $0x8] sm:$0xff]
    %v250 = vld [vmem:[%s4 + $0x10] sm:$0xff]
    %v251 = vld [vmem:[%s4 + $0x18] sm:$0xff]
    %v252 = vld [vmem:[%s4 + $0x20] sm:$0xff]
    %v253 = vld [vmem:[%s4 + $0x28] sm:$0xff]
    %v254 = vld [vmem:[%s4 + $0x30] sm:$0xff]
    %v255 = vld [vmem:[%s4 + $0x38] sm:$0xff]
    %v256 = vld [vmem:[%s4 + $0x40] sm:$0xff]
    %v257 = vld [vmem:[%s4 + $0x48] sm:$0xff]
    %v258 = vld [vmem:[%s4 + $0x50] sm:$0xff]
    %v259 = vld [vmem:[%s4 + $0x58] sm:$0xff]
    %v260 = vld [vmem:[%s4 + $0x60] sm:$0xff]
    %v261 = vld [vmem:[%s4 + $0x68] sm:$0xff]
    %v262 = vld [vmem:[%s4 + $0x70] sm:$0xff]
    %v263 = vld [vmem:[%s4 + $0x78] sm:$0xff]
    %264 = vmatprep.subr.mxu0 0.0
    %265 = vmatpush1.msra.mxu0 %v248
    %266 = vmatprep.subr.mxu0 0.0
    %267 = vmatpush1.msra.mxu0 %v249
    %268 = vmatprep.subr.mxu0 0.0
    %269 = vmatpush1.msra.mxu0 %v250
    %270 = vmatprep.subr.mxu0 0.0
    %271 = vmatpush1.msra.mxu0 %v251
    %272 = vmatprep.subr.mxu0 0.0
    %273 = vmatpush1.msra.mxu0 %v252
    %274 = vmatprep.subr.mxu0 0.0
    %275 = vmatpush1.msra.mxu0 %v253
    %276 = vmatprep.subr.mxu0 0.0
    %277 = vmatpush1.msra.mxu0 %v254
    %278 = vmatprep.subr.mxu0 0.0
    %279 = vmatpush1.msra.mxu0 %v255
    %280 = vmatprep.subr.mxu0 0.0
    %281 = vmatpush1.msra.mxu0 %v256
    %282 = vmatprep.subr.mxu0 0.0
    %283 = vmatpush1.msra.mxu0 %v257
    %284 = vmatprep.subr.mxu0 0.0
    %285 = vmatpush1.msra.mxu0 %v258
    %286 = vmatprep.subr.mxu0 0.0
    %287 = vmatpush1.msra.mxu0 %v259
    %288 = vmatprep.subr.mxu0 0.0
    %289 = vmatpush1.msra.mxu0 %v260
    %290 = vmatprep.subr.mxu0 0.0
    %291 = vmatpush1.msra.mxu0 %v261
    %292 = vmatprep.subr.mxu0 0.0
    %293 = vmatpush1.msra.mxu0 %v262
    %294 = vmatprep.subr.mxu0 0.0
    %295 = vmatpush1.msra.mxu0 %v263
    %296 = vmatprep.subr.mxu0 0.0
    %297 = vmatpush1.msra.mxu0 0.0
    %298 = vmatprep.subr.mxu0 0.0
    %299 = vmatpush1.msra.mxu0 0.0
    %300 = vmatprep.subr.mxu0 0.0
    %301 = vmatpush1.msra.mxu0 0.0
    %302 = vmatprep.subr.mxu0 0.0
    %303 = vmatpush1.msra.mxu0 0.0
    %304 = vmatprep.subr.mxu0 0.0
    %305 = vmatpush1.msra.mxu0 0.0
    %306 = vmatprep.subr.mxu0 0.0
    %307 = vmatpush1.msra.mxu0 0.0
    %308 = vmatprep.subr.mxu0 0.0
    %309 = vmatpush1.msra.mxu0 0.0
    %310 = vmatprep.subr.mxu0 0.0
    %311 = vmatpush1.msra.mxu0 0.0
    %312 = vmatprep.subr.mxu0 0.0
    %313 = vmatpush1.msra.mxu0 0.0
    %314 = vmatprep.subr.mxu0 0.0
    %315 = vmatpush1.msra.mxu0 0.0
    %316 = vmatprep.subr.mxu0 0.0
    %317 = vmatpush1.msra.mxu0 0.0
    %318 = vmatprep.subr.mxu0 0.0
    %319 = vmatpush1.msra.mxu0 0.0
    %320 = vmatprep.subr.mxu0 0.0
    %321 = vmatpush1.msra.mxu0 0.0
    %322 = vmatprep.subr.mxu0 0.0
    %323 = vmatpush1.msra.mxu0 0.0
    %324 = vmatprep.subr.mxu0 0.0
    %325 = vmatpush1.msra.mxu0 0.0
    %326 = vmatprep.subr.mxu0 0.0
    %327 = vmatpush1.msra.mxu0 0.0
    %328 = vmatprep.mubr.f32.mxu0 0.0
    %329 = vmatmul.mubr.f32.gmra.mrb[0].mxu0 %v246
    %v330 = vpop.f32.mrb[0].mxu0
    %v331 = vadd.f32 0.0, %v330
    %v332 = vpop.f32.mrb[0].mxu0
    %333 = vmatprep.mubr.f32.mxu0 0.0
    %334 = vmatmul.mubr.f32.gmra.mrb[0].mxu0 %v247
    %v335 = vpop.f32.mrb[0].mxu0
    %v336 = vadd.f32 0.0, %v335
    %v337 = vpop.f32.mrb[0].mxu0
    %338 = vdwg.mxu0
    %vm339 = vcmask 31744
    %340 = vst.msk [vmem:[%s5] sm:$0xff] %vm339, %v331
    %341 = vst.msk [vmem:[%s5 + $0x8] sm:$0xff] %vm339, %v336
    // Predicated region
    $region30: #{tpu_custom_call.1} parent=1 // pred_check
      _
    $region31: #{tpu_custom_call.1} parent=1 // pred_check_branch
      %343 = sbr.rel (0) target = $region33
    $region32: #{tpu_custom_call.1} parent=1 // pred_region
      _
    $region33: #{tpu_custom_call.1} parent=1 // pred_fallthru
      _
    // Predicated region
    $region34: #{tpu_custom_call.1} parent=1 // pred_check
      _
    $region35: #{tpu_custom_call.1} parent=1 // pred_check_branch
      %345 = sbr.rel (0) target = $region37
    $region36: #{tpu_custom_call.1} parent=1 // pred_region
      _
    $region37: #{tpu_custom_call.1} parent=1 // pred_fallthru
      _
    %346 = vsyncpa [#allocation3], 1
    %347 = vsyncpa [#allocation5], 1

</llo_original>
